<compile_context>
chip_gen: v5e
topology: v5e:2x2
jax: 0.10.0
libtpu: 0.0.40
codegen_flags: <defaults>
</compile_context>

<pallas_src>
import numpy as np
import jax
import jax.numpy as jnp
from jax.experimental import pallas as pl
from jax.experimental.pallas import tpu as pltpu

INF = 1e20       # matches the PyTorch module's masked_fill value
PAD_NEG = -1e30  # fill for padded answer columns (-> exactly zero probability)


def _round_up(x, m):
    return ((x + m - 1) // m) * m


def _c2a_kernel(ctx_ref, ansT_ref, oans_ref, mask_ref, wt_ref, w_ref, out_ref):
    """One grid step = one tile of Bt batch items.

    ctx_ref : (Bt*Lp, D)   matmul dtype (bf16 or f32)
    ansT_ref: (D, Bt*Np)   answers pre-transposed (no in-kernel transpose)
    oans_ref: (Bt*Np, Dp)  out_answers, feature dim lane-padded
    mask_ref: (Bt, 1, Np)  f32; >0 -> keep, else the value IS the fill
    wt_ref  : (D, Hp)      W^T (zero-padded), VMEM-resident
    w_ref   : (Hp, D)      W   (zero-padded), VMEM-resident
    out_ref : (Bt*Lp, Dp)  f32
    """
    bt = mask_ref.shape[0]
    np_ = mask_ref.shape[2]
    lp = ctx_ref.shape[0] // bt
    mm_dtype = ctx_ref.dtype
    approx = jnp.dtype(mm_dtype) == jnp.dtype(jnp.bfloat16)

    # Fused projections for the whole batch tile (fills the MXU M dimension).
    cf = jnp.maximum(
        jnp.dot(ctx_ref[...], wt_ref[...],
                preferred_element_type=jnp.float32), 0.0)        # (Bt*Lp, Hp)
    qf_t = jnp.maximum(
        jnp.dot(w_ref[...], ansT_ref[...],
                preferred_element_type=jnp.float32), 0.0)        # (Hp, Bt*Np)
    cf = cf.astype(mm_dtype)
    qf_t = qf_t.astype(mm_dtype)

    # Per-batch-item attention / softmax / output (static, fully unrolled).
    for b in range(bt):
        att = jnp.dot(cf[b * lp:(b + 1) * lp, :],
                      qf_t[:, b * np_:(b + 1) * np_],
                      preferred_element_type=jnp.float32)        # (Lp, Np) f32
        m = mask_ref[b]                                          # (1, Np)
        # m > 0 -> keep; otherwise m already holds -INF (real masked answer,
        # matching torch.masked_fill) or PAD_NEG (padded column / batch).
        att = jnp.where(m > 0.0, att, m)

        att_max = jnp.max(att, axis=-1, keepdims=True)
        p = jnp.exp(att - att_max)
        denom = jnp.sum(p, axis=-1, keepdims=True)
        prob = p * pl.reciprocal(denom, approx=approx)           # (Lp, Np) f32

        out_ref[pl.ds(b * lp, lp), :] = jnp.dot(
            prob.astype(mm_dtype), oans_ref[pl.ds(b * np_, np_), :],
            preferred_element_type=jnp.float32).astype(out_ref.dtype)


def context2answer_attention(context, answers, out_answers, weight,
                             ans_mask=None, *, matmul_dtype=jnp.bfloat16):
    """context: [B, L, D], answers/out_answers: [B, N, D],
    weight: [H, D] (= nn.Linear(dim, hidden_size, bias=False).weight),
    ans_mask: [B, N] or None.  Returns ques_emb: [B, L, D] (float32)."""
    B, L, D = context.shape
    _, N, _ = answers.shape
    H = weight.shape[0]

    Lp = _round_up(L, 8)      # sublane-align sequence dim
    Np = _round_up(N, 128)    # lane-align answer dim (softmax axis)
    Hp = _round_up(H, 128)    # lane-align hidden dim
    Dp = _round_up(D, 128)    # lane-align OUTPUT feature dim only

    # Fold batch items into each grid step so the projection matmuls use
    # ~256 MXU rows; for tiny B this collapses to a single grid step.
    Bt = max(1, min(B, 256 // Lp))
    Bp = _round_up(B, Bt)

    md = matmul_dtype
    f32 = jnp.float32

    # context -> (Bp*Lp, D); feature dim left at D (full-dim lane block).
    ctx_p = jnp.zeros((Bp, Lp, D), md).at[:B, :L, :].set(context.astype(md))
    ctx_p = ctx_p.reshape(Bp * Lp, D)

    # answers pre-transposed -> (D, Bp*Np): qf^T comes straight out of the MXU.
    ans_t = jnp.zeros((D, Bp, Np), md).at[:, :B, :N].set(
        jnp.transpose(answers, (2, 0, 1)).astype(md))
    ans_t = ans_t.reshape(D, Bp * Np)

    # out_answers -> (Bp*Np, Dp): lane-padded so the final matmul writes a
    # lane-dense (Lp, Dp) tile (unmasked stores).
    oans_p = jnp.zeros((Bp, Np, Dp), md).at[:B, :N, :D].set(
        out_answers.astype(md))
    oans_p = oans_p.reshape(Bp * Np, Dp)

    # Mask carries its own fill value: >0 keep; -INF real masked answer
    # (torch masked_fill); PAD_NEG padded column / padded batch item.
    if ans_mask is None:
        real = jnp.ones((B, N), f32)
    else:
        real = jnp.where(ans_mask.astype(f32) != 0.0, 1.0, -INF).astype(f32)
    mask_p = jnp.full((Bp, 1, Np), PAD_NEG, f32).at[:B, 0, :N].set(real)

    # Both W^T (context projection) and W (transposed answer projection);
    # tiny, constant index_map -> VMEM-resident across the grid.
    wt_p = jnp.zeros((D, Hp), md).at[:, :H].set(jnp.transpose(weight).astype(md))
    w_p = jnp.zeros((Hp, D), md).at[:H, :].set(weight.astype(md))

    grid_spec = pltpu.PrefetchScalarGridSpec(
        num_scalar_prefetch=0,
        grid=(Bp // Bt,),
        in_specs=[
            pl.BlockSpec((Bt * Lp, D), lambda i: (i, 0)),    # context tile
            pl.BlockSpec((D, Bt * Np), lambda i: (0, i)),    # answers^T tile
            pl.BlockSpec((Bt * Np, Dp), lambda i: (i, 0)),   # out_answers tile
            pl.BlockSpec((Bt, 1, Np), lambda i: (i, 0, 0)),  # mask/fill tile
            pl.BlockSpec((D, Hp), lambda i: (0, 0)),         # W^T (resident)
            pl.BlockSpec((Hp, D), lambda i: (0, 0)),         # W   (resident)
        ],
        out_specs=pl.BlockSpec((Bt * Lp, Dp), lambda i: (i, 0)),
    )

    out = pl.pallas_call(
        _c2a_kernel,
        out_shape=jax.ShapeDtypeStruct((Bp * Lp, Dp), f32),
        grid_spec=grid_spec,
        compiler_params=pltpu.CompilerParams(
            dimension_semantics=("parallel",)),
    )(ctx_p, ans_t, oans_p, mask_p, wt_p, w_p)

    # Static slices: jit-friendly, no host sync.
    return out.reshape(Bp, Lp, Dp)[:B, :L, :D]


def _reference(context, answers, out_answers, weight, ans_mask=None):
    """Pure-JAX (f32) reference of the PyTorch forward."""
    cf = jax.nn.relu(jnp.einsum('bld,hd->blh', context, weight))
    qf = jax.nn.relu(jnp.einsum('bnd,hd->bnh', answers, weight))
    att = jnp.einsum('blh,bnh->bln', cf, qf)
    if ans_mask is not None:
        att = jnp.where(ans_mask[:, None, :] > 0, att, -INF)
    prob = jax.nn.softmax(att, axis=-1)
    return jnp.einsum('bln,bnd->bld', prob, out_answers)


if __name__ == "__main__":
    # Small shapes consistent with the module: batch=2, L=16, N=8, dim=16,
    # hidden_size=32.
    B, L, N, D, H = 2, 16, 8, 16, 32
    key = jax.random.PRNGKey(0)
    k1, k2, k3, k4 = jax.random.split(key, 4)

    bound = 1.0 / np.sqrt(D)
    weight = jax.random.uniform(k1, (H, D), jnp.float32, -bound, bound)
    context = jax.random.normal(k2, (B, L, D), jnp.float32)
    answers = jax.random.normal(k3, (B, N, D), jnp.float32)
    out_answers = jax.random.normal(k4, (B, N, D), jnp.float32)

    # Mask out the tail answers of each batch item (at least one valid).
    ans_mask = jnp.array(
        [[1, 1, 1, 1, 1, 0, 0, 0],
         [1, 1, 1, 0, 0, 0, 0, 0]], dtype=jnp.float32)

    ref = _reference(context, answers, out_answers, weight, ans_mask)

    # Exact path (f32 MXU operands): matches PyTorch to 1e-5.
    out_f32 = context2answer_attention(context, answers, out_answers, weight,
                                       ans_mask, matmul_dtype=jnp.float32)
    jax.block_until_ready(out_f32)
    np.testing.assert_allclose(np.asarray(out_f32), np.asarray(ref),
                               rtol=1e-5, atol=1e-5)

    # Fast path (default): bf16 MXU operands, f32 accumulation / softmax.
    out_bf16 = context2answer_attention(context, answers, out_answers, weight,
                                        ans_mask)
    jax.block_until_ready(out_bf16)
    np.testing.assert_allclose(np.asarray(out_bf16), np.asarray(ref),
                               rtol=5e-2, atol=1e-1)

    # ans_mask=None path (PyTorch `if ans_mask is not None`).
    out_nm = context2answer_attention(context, answers, out_answers, weight,
                                      matmul_dtype=jnp.float32)
    jax.block_until_ready(out_nm)
    ref_nm = _reference(context, answers, out_answers, weight)
    np.testing.assert_allclose(np.asarray(out_nm), np.asarray(ref_nm),
                               rtol=1e-5, atol=1e-5)

    print("KERNEL_OK")
</pallas_src>

<mosaic_0001>
module attributes {stable_mosaic.version = 11 : i64} {
  func.func @_c2a_kernel(%arg0: i32, %arg1: memref<32x16xf32, #tpu.memory_space<vmem>>, %arg2: memref<16x256xf32, #tpu.memory_space<vmem>>, %arg3: memref<256x128xf32, #tpu.memory_space<vmem>>, %arg4: memref<2x1x128xf32, #tpu.memory_space<vmem>>, %arg5: memref<16x128xf32, #tpu.memory_space<vmem>>, %arg6: memref<128x16xf32, #tpu.memory_space<vmem>>, %arg7: memref<32x128xf32, #tpu.memory_space<vmem>>) attributes {dimension_semantics = [#tpu.dimension_semantics<parallel>], iteration_bounds = array<i64: 1>, scalar_prefetch = 0 : i64, scratch_operands = 0 : i64, tpu.core_type = #tpu.core_type<tc>, window_params = [{transform_indices = @transform_0, window_bounds = array<i64: 32, 16>}, {transform_indices = @transform_1, window_bounds = array<i64: 16, 256>}, {transform_indices = @transform_2, window_bounds = array<i64: 256, 128>}, {transform_indices = @transform_3, window_bounds = array<i64: 2, 1, 128>}, {pipeline_mode = #tpu.pipeline_mode<synchronous>, transform_indices = @transform_4, window_bounds = array<i64: 16, 128>}, {pipeline_mode = #tpu.pipeline_mode<synchronous>, transform_indices = @transform_5, window_bounds = array<i64: 128, 16>}, {transform_indices = @transform_6, window_bounds = array<i64: 32, 128>}]} {
    %c0 = arith.constant 0 : index
    %c0_0 = arith.constant 0 : index
    %0 = vector.load %arg1[%c0, %c0_0] : memref<32x16xf32, #tpu.memory_space<vmem>>, vector<32x16xf32>
    %c0_1 = arith.constant 0 : index
    %c0_2 = arith.constant 0 : index
    %1 = vector.load %arg5[%c0_1, %c0_2] : memref<16x128xf32, #tpu.memory_space<vmem>>, vector<16x128xf32>
    %cst = arith.constant dense<0.000000e+00> : vector<32x128xf32>
    %2 = tpu.matmul %0, %1, %cst {dimension_numbers = #tpu.dot_dimension_numbers<[1], [0], [0], [1], [0, 0, 1, 1], [], []>} : vector<32x16xf32>, vector<16x128xf32>, vector<32x128xf32> -> vector<32x128xf32>
    %cst_3 = arith.constant 0.000000e+00 : f32
    %3 = vector.broadcast %cst_3 : f32 to vector<32x128xf32>
    %4 = arith.maximumf %2, %3 : vector<32x128xf32>
    %c0_4 = arith.constant 0 : index
    %c0_5 = arith.constant 0 : index
    %5 = vector.load %arg6[%c0_4, %c0_5] : memref<128x16xf32, #tpu.memory_space<vmem>>, vector<128x16xf32>
    %c0_6 = arith.constant 0 : index
    %c0_7 = arith.constant 0 : index
    %6 = vector.load %arg2[%c0_6, %c0_7] : memref<16x256xf32, #tpu.memory_space<vmem>>, vector<16x256xf32>
    %cst_8 = arith.constant dense<0.000000e+00> : vector<128x256xf32>
    %7 = tpu.matmul %5, %6, %cst_8 {dimension_numbers = #tpu.dot_dimension_numbers<[1], [0], [0], [1], [0, 0, 1, 1], [], []>} : vector<128x16xf32>, vector<16x256xf32>, vector<128x256xf32> -> vector<128x256xf32>
    %cst_9 = arith.constant 0.000000e+00 : f32
    %8 = vector.broadcast %cst_9 : f32 to vector<128x256xf32>
    %9 = arith.maximumf %7, %8 : vector<128x256xf32>
    %10 = vector.extract_strided_slice %4 {offsets = [0, 0], sizes = [16, 128], strides = [1, 1]} : vector<32x128xf32> to vector<16x128xf32>
    %11 = vector.extract_strided_slice %9 {offsets = [0, 0], sizes = [128, 128], strides = [1, 1]} : vector<128x256xf32> to vector<128x128xf32>
    %cst_10 = arith.constant dense<0.000000e+00> : vector<16x128xf32>
    %12 = tpu.matmul %10, %11, %cst_10 {dimension_numbers = #tpu.dot_dimension_numbers<[1], [0], [0], [1], [0, 0, 1, 1], [], []>} : vector<16x128xf32>, vector<128x128xf32>, vector<16x128xf32> -> vector<16x128xf32>
    %c0_11 = arith.constant 0 : index
    %c0_12 = arith.constant 0 : index
    %c0_13 = arith.constant 0 : index
    %13 = vector.load %arg4[%c0_11, %c0_12, %c0_13] : memref<2x1x128xf32, #tpu.memory_space<vmem>>, vector<1x1x128xf32>
    %14 = vector.shape_cast %13 : vector<1x1x128xf32> to vector<1x128xf32>
    %cst_14 = arith.constant 0.000000e+00 : f32
    %15 = vector.broadcast %cst_14 : f32 to vector<1x128xf32>
    %16 = arith.cmpf ogt, %14, %15 : vector<1x128xf32>
    %17 = vector.shape_cast %16 : vector<1x128xi1> to vector<1x128xi1>
    %18 = vector.broadcast %17 : vector<1x128xi1> to vector<16x128xi1>
    %19 = vector.shape_cast %14 : vector<1x128xf32> to vector<1x128xf32>
    %20 = vector.broadcast %19 : vector<1x128xf32> to vector<16x128xf32>
    %21 = arith.select %18, %12, %20 : vector<16x128xi1>, vector<16x128xf32>
    %cst_15 = arith.constant dense<0xFF800000> : vector<16xf32>
    %22 = vector.multi_reduction <maximumf>, %21, %cst_15 [1] : vector<16x128xf32> to vector<16xf32>
    %23 = vector.shape_cast %22 : vector<16xf32> to vector<16x1xf32>
    %24 = vector.broadcast %23 : vector<16x1xf32> to vector<16x128xf32>
    %25 = arith.subf %21, %24 : vector<16x128xf32>
    %26 = math.exp %25 : vector<16x128xf32>
    %cst_16 = arith.constant dense<0.000000e+00> : vector<16xf32>
    %27 = vector.multi_reduction <add>, %26, %cst_16 [1] : vector<16x128xf32> to vector<16xf32>
    %28 = vector.shape_cast %27 : vector<16xf32> to vector<16x1xf32>
    %29 = tpu.reciprocal %28 : vector<16x1xf32> -> vector<16x1xf32>
    %30 = vector.broadcast %29 : vector<16x1xf32> to vector<16x128xf32>
    %31 = arith.mulf %26, %30 : vector<16x128xf32>
    %c0_17 = arith.constant 0 : index
    %c0_18 = arith.constant 0 : index
    %32 = vector.load %arg3[%c0_17, %c0_18] : memref<256x128xf32, #tpu.memory_space<vmem>>, vector<128x128xf32>
    %cst_19 = arith.constant dense<0.000000e+00> : vector<16x128xf32>
    %33 = tpu.matmul %31, %32, %cst_19 {dimension_numbers = #tpu.dot_dimension_numbers<[1], [0], [0], [1], [0, 0, 1, 1], [], []>} : vector<16x128xf32>, vector<128x128xf32>, vector<16x128xf32> -> vector<16x128xf32>
    %c0_20 = arith.constant 0 : index
    %c0_21 = arith.constant 0 : index
    %34 = vector.load %arg7[%c0_20, %c0_21] : memref<32x128xf32, #tpu.memory_space<vmem>>, vector<16x128xf32>
    tpu.vector_store %arg7[%c0_20, %c0_21], %33 {strides = array<i32>} : memref<32x128xf32, #tpu.memory_space<vmem>>, vector<16x128xf32>,
    %35 = vector.extract_strided_slice %4 {offsets = [16, 0], sizes = [16, 128], strides = [1, 1]} : vector<32x128xf32> to vector<16x128xf32>
    %36 = vector.extract_strided_slice %9 {offsets = [0, 128], sizes = [128, 128], strides = [1, 1]} : vector<128x256xf32> to vector<128x128xf32>
    %cst_22 = arith.constant dense<0.000000e+00> : vector<16x128xf32>
    %37 = tpu.matmul %35, %36, %cst_22 {dimension_numbers = #tpu.dot_dimension_numbers<[1], [0], [0], [1], [0, 0, 1, 1], [], []>} : vector<16x128xf32>, vector<128x128xf32>, vector<16x128xf32> -> vector<16x128xf32>
    %c1 = arith.constant 1 : index
    %c0_23 = arith.constant 0 : index
    %c0_24 = arith.constant 0 : index
    %38 = vector.load %arg4[%c1, %c0_23, %c0_24] : memref<2x1x128xf32, #tpu.memory_space<vmem>>, vector<1x1x128xf32>
    %39 = vector.shape_cast %38 : vector<1x1x128xf32> to vector<1x128xf32>
    %cst_25 = arith.constant 0.000000e+00 : f32
    %40 = vector.broadcast %cst_25 : f32 to vector<1x128xf32>
    %41 = arith.cmpf ogt, %39, %40 : vector<1x128xf32>
    %42 = vector.shape_cast %41 : vector<1x128xi1> to vector<1x128xi1>
    %43 = vector.broadcast %42 : vector<1x128xi1> to vector<16x128xi1>
    %44 = vector.shape_cast %39 : vector<1x128xf32> to vector<1x128xf32>
    %45 = vector.broadcast %44 : vector<1x128xf32> to vector<16x128xf32>
    %46 = arith.select %43, %37, %45 : vector<16x128xi1>, vector<16x128xf32>
    %cst_26 = arith.constant dense<0xFF800000> : vector<16xf32>
    %47 = vector.multi_reduction <maximumf>, %46, %cst_26 [1] : vector<16x128xf32> to vector<16xf32>
    %48 = vector.shape_cast %47 : vector<16xf32> to vector<16x1xf32>
    %49 = vector.broadcast %48 : vector<16x1xf32> to vector<16x128xf32>
    %50 = arith.subf %46, %49 : vector<16x128xf32>
    %51 = math.exp %50 : vector<16x128xf32>
    %cst_27 = arith.constant dense<0.000000e+00> : vector<16xf32>
    %52 = vector.multi_reduction <add>, %51, %cst_27 [1] : vector<16x128xf32> to vector<16xf32>
    %53 = vector.shape_cast %52 : vector<16xf32> to vector<16x1xf32>
    %54 = tpu.reciprocal %53 : vector<16x1xf32> -> vector<16x1xf32>
    %55 = vector.broadcast %54 : vector<16x1xf32> to vector<16x128xf32>
    %56 = arith.mulf %51, %55 : vector<16x128xf32>
    %c128 = arith.constant 128 : index
    %c0_28 = arith.constant 0 : index
    %57 = vector.load %arg3[%c128, %c0_28] : memref<256x128xf32, #tpu.memory_space<vmem>>, vector<128x128xf32>
    %cst_29 = arith.constant dense<0.000000e+00> : vector<16x128xf32>
    %58 = tpu.matmul %56, %57, %cst_29 {dimension_numbers = #tpu.dot_dimension_numbers<[1], [0], [0], [1], [0, 0, 1, 1], [], []>} : vector<16x128xf32>, vector<128x128xf32>, vector<16x128xf32> -> vector<16x128xf32>
    %c16 = arith.constant 16 : index
    %c0_30 = arith.constant 0 : index
    %59 = vector.load %arg7[%c16, %c0_30] : memref<32x128xf32, #tpu.memory_space<vmem>>, vector<16x128xf32>
    tpu.vector_store %arg7[%c16, %c0_30], %58 {strides = array<i32>} : memref<32x128xf32, #tpu.memory_space<vmem>>, vector<16x128xf32>,
    return
  }
  func.func @transform_0(%arg0: i32) -> (i32, i32) {
    %c0_i32 = arith.constant 0 : i32
    %c0_i32_0 = arith.constant 0 : i32
    return %arg0, %c0_i32 : i32, i32
  }
  func.func @transform_1(%arg0: i32) -> (i32, i32) {
    %c0_i32 = arith.constant 0 : i32
    %c0_i32_0 = arith.constant 0 : i32
    return %c0_i32, %arg0 : i32, i32
  }
  func.func @transform_2(%arg0: i32) -> (i32, i32) {
    %c0_i32 = arith.constant 0 : i32
    %c0_i32_0 = arith.constant 0 : i32
    return %arg0, %c0_i32 : i32, i32
  }
  func.func @transform_3(%arg0: i32) -> (i32, i32, i32) {
    %c0_i32 = arith.constant 0 : i32
    %c0_i32_0 = arith.constant 0 : i32
    %c0_i32_1 = arith.constant 0 : i32
    return %arg0, %c0_i32, %c0_i32_0 : i32, i32, i32
  }
  func.func @transform_4(%arg0: i32) -> (i32, i32) {
    %c0_i32 = arith.constant 0 : i32
    %c0_i32_0 = arith.constant 0 : i32
    %c0_i32_1 = arith.constant 0 : i32
    return %c0_i32, %c0_i32_0 : i32, i32
  }
  func.func @transform_5(%arg0: i32) -> (i32, i32) {
    %c0_i32 = arith.constant 0 : i32
    %c0_i32_0 = arith.constant 0 : i32
    %c0_i32_1 = arith.constant 0 : i32
    return %c0_i32, %c0_i32_0 : i32, i32
  }
  func.func @transform_6(%arg0: i32) -> (i32, i32) {
    %c0_i32 = arith.constant 0 : i32
    %c0_i32_0 = arith.constant 0 : i32
    return %arg0, %c0_i32 : i32, i32
  }
}

</mosaic_0001>

<llo_original>
// kernel: tpu_custom_call.1
$region0: #{tpu_custom_call.1}
  #allocation0 [shape = 'u32[]', space=smem, size = 0x4, offset = 0x4, fixed_abs, tag = 'smem constant byte address 0x4 - core index']
  #allocation1 [shape = 'u32[72,128]{1,0:T(1,128)}', space=vmem, size = 0x9000, scoped, tag = 'internal scratch']
  %s0 = inlined_call_operand.vmem [shape: f32[32,16], index: 0, kind: input, shape index: {}]
  %s1 = inlined_call_operand.vmem [shape: f32[16,256], index: 1, kind: input, shape index: {}]
  %s2 = inlined_call_operand.hbm [shape: f32[256,128], index: 2, kind: input, shape index: {}]
  %s3 = inlined_call_operand.vmem [shape: f32[2,1,128], index: 3, kind: input, shape index: {}]
  %s4 = inlined_call_operand.vmem [shape: f32[16,128], index: 4, kind: input, shape index: {}]
  %s5 = inlined_call_operand.vmem [shape: f32[128,16], index: 5, kind: input, shape index: {}]
  %s6 = inlined_call_operand.hbm [shape: f32[32,128], index: 6, kind: output, shape index: {}]
  %s7 = sld [smem:[#allocation0]]
  $region38: #{tpu_custom_call.1} parent=0
    _
  %s9 = ssub.s32 1, %s7
  %s10 = scalar_select 0, %s9, %s7
  $region1: #{tpu_custom_call.1} parent=0
    #allocation2 [shape = 'u8[131072]{0}', space=vmem, size = 0x20000, scoped, tag = 'input window, operand 2, single buffered']
    #allocation3 [shape = 's32[1]{0}', space=sflag, size = 0x4, scoped, tag = 'scoped memory for tpu_custom_call.1']
    #allocation4 [shape = 's32[1]{0}', space=sflag, size = 0x4, scoped, tag = 'scoped memory for tpu_custom_call.1']
    #allocation5 [shape = 'u8[16384]{0}', space=vmem, size = 0x4000, scoped, tag = 'output window, operand 0, single buffered']
    %11 = vsyncpa [#allocation3], 0
    %12 = vsyncpa [#allocation4], 0
    // Predicated region
    $region2: #{tpu_custom_call.1} parent=1 // pred_check
      _
    $region3: #{tpu_custom_call.1} parent=1 // pred_check_branch
      %14 = sbr.rel (0) target = $region5
    $region4: #{tpu_custom_call.1} parent=1 // pred_region
      _
    $region5: #{tpu_custom_call.1} parent=1 // pred_fallthru
      _
    // Predicated region
    $region6: #{tpu_custom_call.1} parent=1 // pred_check
      _
    $region7: #{tpu_custom_call.1} parent=1 // pred_check_branch
      %16 = sbr.rel (0) target = $region9
    $region8: #{tpu_custom_call.1} parent=1 // pred_region
      _
    $region9: #{tpu_custom_call.1} parent=1 // pred_fallthru
      _
    // Predicated region
    $region10: #{tpu_custom_call.1} parent=1 // pred_check
      _
    $region11: #{tpu_custom_call.1} parent=1 // pred_check_branch
      %18 = sbr.rel (0) target = $region13
    $region12: #{tpu_custom_call.1} parent=1 // pred_region
      %20 = vsyncadd [#allocation3], 0
      %s21 = sshll.u32 %s2, 4
      %s22 = int_to_ptr.hbm [resolvable:$true] %s21
      %s23 = sshll.u32 [#allocation2], 4
      %s24 = int_to_ptr.vmem [resolvable:$true] %s23
      %29 = dma.hbm_to_vmem [thread:$0]  %s22, 4096, %s24, [#allocation3], 128, 128, 8
    $region13: #{tpu_custom_call.1} parent=1 // pred_fallthru
      _
    // Predicated region
    $region14: #{tpu_custom_call.1} parent=1 // pred_check
      _
    $region15: #{tpu_custom_call.1} parent=1 // pred_check_branch
      %31 = sbr.rel (0) target = $region17
    $region16: #{tpu_custom_call.1} parent=1 // pred_region
      _
    $region17: #{tpu_custom_call.1} parent=1 // pred_fallthru
      _
    // Predicated region
    $region18: #{tpu_custom_call.1} parent=1 // pred_check
      _
    $region19: #{tpu_custom_call.1} parent=1 // pred_check_branch
      %33 = sbr.rel (0) target = $region21
    $region20: #{tpu_custom_call.1} parent=1 // pred_region
      _
    $region21: #{tpu_custom_call.1} parent=1 // pred_fallthru
      _
    // Predicated region
    $region22: #{tpu_custom_call.1} parent=1 // pred_check
      _
    $region23: #{tpu_custom_call.1} parent=1 // pred_check_branch
      %35 = sbr.rel (0) target = $region25
    $region24: #{tpu_custom_call.1} parent=1 // pred_region
      _
    $region25: #{tpu_custom_call.1} parent=1 // pred_fallthru
      _
    // Predicated region
    $region26: #{tpu_custom_call.1} parent=1 // pred_check
      _
    $region27: #{tpu_custom_call.1} parent=1 // pred_check_branch
      %37 = sbr.rel (0) target = $region29
    $region28: #{tpu_custom_call.1} parent=1 // pred_region
      %39 = dma.done [#allocation3], 4096
    $region29: #{tpu_custom_call.1} parent=1 // pred_fallthru
      _
    %v40 = vld [vmem:[%s0] sm:$0xff]
    %v41 = vld [vmem:[%s0 + $0x8] sm:$0xff]
    %v42 = vld [vmem:[%s0 + $0x10] sm:$0xff]
    %v43 = vld [vmem:[%s0 + $0x18] sm:$0xff]
    %v44 = vld [vmem:[%s4] sm:$0xff]
    %v45 = vld [vmem:[%s4 + $0x8] sm:$0xff]
    %vm46 = vcmask 130048
    %v48 = vsel %vm46, %v40, 0
    %v51 = vsel %vm46, %v41, 0
    %v54 = vsel %vm46, %v42, 0
    %v57 = vsel %vm46, %v43, 0
    %59 = vmatpush.msra.mxu0 0.0
    %60 = vmatpush.msra.mxu0 0.0
    %61 = vmatpush.msra.mxu0 0.0
    %62 = vmatpush.msra.mxu0 0.0
    %63 = vmatpush.msra.mxu0 0.0
    %64 = vmatpush.msra.mxu0 0.0
    %65 = vmatpush.msra.mxu0 0.0
    %66 = vmatpush.msra.mxu0 0.0
    %67 = vmatpush.msra.mxu0 0.0
    %68 = vmatpush.msra.mxu0 0.0
    %69 = vmatpush.msra.mxu0 0.0
    %70 = vmatpush.msra.mxu0 0.0
    %71 = vmatpush.msra.mxu0 0.0
    %72 = vmatpush.msra.mxu0 0.0
    %73 = vmatpush.msra.mxu0 %v45
    %74 = vmatpush.msra.mxu0 %v44
    %75 = vmatmul.f32.gmra.mxu0 %v48
    %v76 = vpop.f32.mrf.mxu0
    %v77 = vadd.f32 0.0, %v76
    %78 = vmatmul.f32.gmra.mxu0 %v51
    %v79 = vpop.f32.mrf.mxu0
    %v80 = vadd.f32 0.0, %v79
    %81 = vmatmul.f32.gmra.mxu0 %v54
    %v82 = vpop.f32.mrf.mxu0
    %v83 = vadd.f32 0.0, %v82
    %84 = vmatmul.f32.gmra.mxu0 %v57
    %v85 = vpop.f32.mrf.mxu0
    %v86 = vadd.f32 0.0, %v85
    %87 = vdwg.mxu0
    %v88 = vmax.f32 %v77, 0.0
    %v89 = vmax.f32 %v80, 0.0
    %v90 = vmax.f32 %v83, 0.0
    %v91 = vmax.f32 %v86, 0.0
    %v92 = vld [vmem:[%s5] sm:$0xff]
    %v93 = vld [vmem:[%s5 + $0x8] sm:$0xff]
    %v94 = vld [vmem:[%s5 + $0x10] sm:$0xff]
    %v95 = vld [vmem:[%s5 + $0x18] sm:$0xff]
    %v96 = vld [vmem:[%s5 + $0x20] sm:$0xff]
    %v97 = vld [vmem:[%s5 + $0x28] sm:$0xff]
    %v98 = vld [vmem:[%s5 + $0x30] sm:$0xff]
    %v99 = vld [vmem:[%s5 + $0x38] sm:$0xff]
    %v100 = vld [vmem:[%s5 + $0x40] sm:$0xff]
    %v101 = vld [vmem:[%s5 + $0x48] sm:$0xff]
    %v102 = vld [vmem:[%s5 + $0x50] sm:$0xff]
    %v103 = vld [vmem:[%s5 + $0x58] sm:$0xff]
    %v104 = vld [vmem:[%s5 + $0x60] sm:$0xff]
    %v105 = vld [vmem:[%s5 + $0x68] sm:$0xff]
    %v106 = vld [vmem:[%s5 + $0x70] sm:$0xff]
    %v107 = vld [vmem:[%s5 + $0x78] sm:$0xff]
    %v108 = vld [vmem:[%s1] sm:$0xff]
    %v109 = vld [vmem:[%s1 + $0x8] sm:$0xff]
    %v110 = vld [vmem:[%s1 + $0x10] sm:$0xff]
    %v111 = vld [vmem:[%s1 + $0x18] sm:$0xff]
    %v113 = vsel %vm46, %v92, 0
    %v116 = vsel %vm46, %v93, 0
    %v119 = vsel %vm46, %v94, 0
    %v122 = vsel %vm46, %v95, 0
    %v125 = vsel %vm46, %v96, 0
    %v128 = vsel %vm46, %v97, 0
    %v131 = vsel %vm46, %v98, 0
    %v134 = vsel %vm46, %v99, 0
    %v137 = vsel %vm46, %v100, 0
    %v140 = vsel %vm46, %v101, 0
    %v143 = vsel %vm46, %v102, 0
    %v146 = vsel %vm46, %v103, 0
    %v149 = vsel %vm46, %v104, 0
    %v152 = vsel %vm46, %v105, 0
    %v155 = vsel %vm46, %v106, 0
    %v158 = vsel %vm46, %v107, 0
    %160 = vmatpush.msra.mxu0 0.0
    %161 = vmatpush.msra.mxu0 0.0
    %162 = vmatpush.msra.mxu0 0.0
    %163 = vmatpush.msra.mxu0 0.0
    %164 = vmatpush.msra.mxu0 0.0
    %165 = vmatpush.msra.mxu0 0.0
    %166 = vmatpush.msra.mxu0 0.0
    %167 = vmatpush.msra.mxu0 0.0
    %168 = vmatpush.msra.mxu0 0.0
    %169 = vmatpush.msra.mxu0 0.0
    %170 = vmatpush.msra.mxu0 0.0
    %171 = vmatpush.msra.mxu0 0.0
    %172 = vmatpush.msra.mxu0 0.0
    %173 = vmatpush.msra.mxu0 0.0
    %174 = vmatpush.msra.mxu0 %v110
    %175 = vmatpush.msra.mxu0 %v108
    %176 = vmatmul.f32.gmra.mxu0 %v113
    %v177 = vpop.f32.mrf.mxu0
    %v178 = vadd.f32 0.0, %v177
    %179 = vmatmul.f32.gmra.mxu0 %v116
    %v180 = vpop.f32.mrf.mxu0
    %v181 = vadd.f32 0.0, %v180
    %182 = vmatmul.f32.gmra.mxu0 %v119
    %v183 = vpop.f32.mrf.mxu0
    %v184 = vadd.f32 0.0, %v183
    %185 = vmatmul.f32.gmra.mxu0 %v122
    %v186 = vpop.f32.mrf.mxu0
    %v187 = vadd.f32 0.0, %v186
    %188 = vmatmul.f32.gmra.mxu0 %v125
    %v189 = vpop.f32.mrf.mxu0
    %v190 = vadd.f32 0.0, %v189
    %191 = vmatmul.f32.gmra.mxu0 %v128
    %v192 = vpop.f32.mrf.mxu0
    %v193 = vadd.f32 0.0, %v192
    %194 = vmatmul.f32.gmra.mxu0 %v131
    %v195 = vpop.f32.mrf.mxu0
    %v196 = vadd.f32 0.0, %v195
    %197 = vmatmul.f32.gmra.mxu0 %v134
    %v198 = vpop.f32.mrf.mxu0
    %v199 = vadd.f32 0.0, %v198
    %200 = vmatmul.f32.gmra.mxu0 %v137
    %v201 = vpop.f32.mrf.mxu0
    %v202 = vadd.f32 0.0, %v201
    %203 = vmatmul.f32.gmra.mxu0 %v140
    %v204 = vpop.f32.mrf.mxu0
    %v205 = vadd.f32 0.0, %v204
    %206 = vmatmul.f32.gmra.mxu0 %v143
    %v207 = vpop.f32.mrf.mxu0
    %v208 = vadd.f32 0.0, %v207
    %209 = vmatmul.f32.gmra.mxu0 %v146
    %v210 = vpop.f32.mrf.mxu0
    %v211 = vadd.f32 0.0, %v210
    %212 = vmatmul.f32.gmra.mxu0 %v149
    %v213 = vpop.f32.mrf.mxu0
    %v214 = vadd.f32 0.0, %v213
    %215 = vmatmul.f32.gmra.mxu0 %v152
    %v216 = vpop.f32.mrf.mxu0
    %v217 = vadd.f32 0.0, %v216
    %218 = vmatmul.f32.gmra.mxu0 %v155
    %v219 = vpop.f32.mrf.mxu0
    %v220 = vadd.f32 0.0, %v219
    %221 = vmatmul.f32.gmra.mxu0 %v158
    %v222 = vpop.f32.mrf.mxu0
    %v223 = vadd.f32 0.0, %v222
    %224 = vdwg.mxu0
    %225 = vmatpush.msra.mxu0 0.0
    %226 = vmatpush.msra.mxu0 0.0
    %227 = vmatpush.msra.mxu0 0.0
    %228 = vmatpush.msra.mxu0 0.0
    %229 = vmatpush.msra.mxu0 0.0
    %230 = vmatpush.msra.mxu0 0.0
    %231 = vmatpush.msra.mxu0 0.0
    %232 = vmatpush.msra.mxu0 0.0
    %233 = vmatpush.msra.mxu0 0.0
    %234 = vmatpush.msra.mxu0 0.0
    %235 = vmatpush.msra.mxu0 0.0
    %236 = vmatpush.msra.mxu0 0.0
    %237 = vmatpush.msra.mxu0 0.0
    %238 = vmatpush.msra.mxu0 0.0
    %239 = vmatpush.msra.mxu0 %v111
    %240 = vmatpush.msra.mxu0 %v109
    %241 = vmatmul.f32.gmra.mxu0 %v113
    %v242 = vpop.f32.mrf.mxu0
    %v243 = vadd.f32 0.0, %v242
    %244 = vmatmul.f32.gmra.mxu0 %v116
    %v245 = vpop.f32.mrf.mxu0
    %v246 = vadd.f32 0.0, %v245
    %247 = vmatmul.f32.gmra.mxu0 %v119
    %v248 = vpop.f32.mrf.mxu0
    %v249 = vadd.f32 0.0, %v248
    %250 = vmatmul.f32.gmra.mxu0 %v122
    %v251 = vpop.f32.mrf.mxu0
    %v252 = vadd.f32 0.0, %v251
    %253 = vmatmul.f32.gmra.mxu0 %v125
    %v254 = vpop.f32.mrf.mxu0
    %v255 = vadd.f32 0.0, %v254
    %256 = vmatmul.f32.gmra.mxu0 %v128
    %v257 = vpop.f32.mrf.mxu0
    %v258 = vadd.f32 0.0, %v257
    %259 = vmatmul.f32.gmra.mxu0 %v131
    %v260 = vpop.f32.mrf.mxu0
    %v261 = vadd.f32 0.0, %v260
    %262 = vmatmul.f32.gmra.mxu0 %v134
    %v263 = vpop.f32.mrf.mxu0
    %v264 = vadd.f32 0.0, %v263
    %265 = vmatmul.f32.gmra.mxu0 %v137
    %v266 = vpop.f32.mrf.mxu0
    %v267 = vadd.f32 0.0, %v266
    %268 = vmatmul.f32.gmra.mxu0 %v140
    %v269 = vpop.f32.mrf.mxu0
    %v270 = vadd.f32 0.0, %v269
    %271 = vmatmul.f32.gmra.mxu0 %v143
    %v272 = vpop.f32.mrf.mxu0
    %v273 = vadd.f32 0.0, %v272
    %274 = vmatmul.f32.gmra.mxu0 %v146
    %v275 = vpop.f32.mrf.mxu0
    %v276 = vadd.f32 0.0, %v275
    %277 = vmatmul.f32.gmra.mxu0 %v149
    %v278 = vpop.f32.mrf.mxu0
    %v279 = vadd.f32 0.0, %v278
    %280 = vmatmul.f32.gmra.mxu0 %v152
    %v281 = vpop.f32.mrf.mxu0
    %v282 = vadd.f32 0.0, %v281
    %283 = vmatmul.f32.gmra.mxu0 %v155
    %v284 = vpop.f32.mrf.mxu0
    %v285 = vadd.f32 0.0, %v284
    %286 = vmatmul.f32.gmra.mxu0 %v158
    %v287 = vpop.f32.mrf.mxu0
    %v288 = vadd.f32 0.0, %v287
    %289 = vdwg.mxu0
    %v290 = vmax.f32 %v178, 0.0
    %v291 = vmax.f32 %v243, 0.0
    %v292 = vmax.f32 %v181, 0.0
    %v293 = vmax.f32 %v246, 0.0
    %v294 = vmax.f32 %v184, 0.0
    %v295 = vmax.f32 %v249, 0.0
    %v296 = vmax.f32 %v187, 0.0
    %v297 = vmax.f32 %v252, 0.0
    %v298 = vmax.f32 %v190, 0.0
    %v299 = vmax.f32 %v255, 0.0
    %v300 = vmax.f32 %v193, 0.0
    %v301 = vmax.f32 %v258, 0.0
    %v302 = vmax.f32 %v196, 0.0
    %v303 = vmax.f32 %v261, 0.0
    %v304 = vmax.f32 %v199, 0.0
    %v305 = vmax.f32 %v264, 0.0
    %v306 = vmax.f32 %v202, 0.0
    %v307 = vmax.f32 %v267, 0.0
    %v308 = vmax.f32 %v205, 0.0
    %v309 = vmax.f32 %v270, 0.0
    %v310 = vmax.f32 %v208, 0.0
    %v311 = vmax.f32 %v273, 0.0
    %v312 = vmax.f32 %v211, 0.0
    %v313 = vmax.f32 %v276, 0.0
    %v314 = vmax.f32 %v214, 0.0
    %v315 = vmax.f32 %v279, 0.0
    %v316 = vmax.f32 %v217, 0.0
    %v317 = vmax.f32 %v282, 0.0
    %v318 = vmax.f32 %v220, 0.0
    %v319 = vmax.f32 %v285, 0.0
    %v320 = vmax.f32 %v223, 0.0
    %v321 = vmax.f32 %v288, 0.0
    %322 = vmatpush.msra.mxu0 %v320
    %323 = vmatpush.msra.mxu0 %v318
    %324 = vmatpush.msra.mxu0 %v316
    %325 = vmatpush.msra.mxu0 %v314
    %326 = vmatpush.msra.mxu0 %v312
    %327 = vmatpush.msra.mxu0 %v310
    %328 = vmatpush.msra.mxu0 %v308
    %329 = vmatpush.msra.mxu0 %v306
    %330 = vmatpush.msra.mxu0 %v304
    %331 = vmatpush.msra.mxu0 %v302
    %332 = vmatpush.msra.mxu0 %v300
    %333 = vmatpush.msra.mxu0 %v298
    %334 = vmatpush.msra.mxu0 %v296
    %335 = vmatpush.msra.mxu0 %v294
    %336 = vmatpush.msra.mxu0 %v292
    %337 = vmatpush.msra.mxu0 %v290
    %338 = vmatmul.f32.gmra.mxu0 %v88
    %v339 = vpop.f32.mrf.mxu0
    %v340 = vadd.f32 0.0, %v339
    %341 = vmatmul.f32.gmra.mxu0 %v89
    %v342 = vpop.f32.mrf.mxu0
    %v343 = vadd.f32 0.0, %v342
    %344 = vdwg.mxu0
    %v345 = vld [vmem:[%s3] sm:$0x1]
    %vm346 = vcmp.gt.f32.partialorder %v345, 0.0
    %v347 = vsel %vm346, 1, 0
    %v348 = vperm.slane %v347, 0
    %vm349 = vcmp.eq.s32.totalorder %v348, 1
    %v351 = vperm.slane %v345, 0
    %v353 = vsel %vm349, %v340, %v351
    %v354 = vsel %vm349, %v343, %v351
    %355 = vmax.xlane.f32.xlu0 %v353
    %v356 = vpop.xlane.xlu0 %355
    %357 = vmax.xlane.f32.xlu0 %v354
    %v358 = vpop.xlane.xlu0 %357
    %v359 = vsub.f32 %v353, %v356
    %v360 = vsub.f32 %v354, %v358
    %v361 = vmul.f32 %v359, 1.442695
    %v362 = vpow.pop %v361
    %v363 = vmul.f32 %v360, 1.442695
    %v364 = vpow.pop %v363
    %365 = vadd.xlane.f32.xlu0 %v362
    %v366 = vpop.xlane.xlu0 %365
    %367 = vadd.xlane.f32.xlu0 %v364
    %v368 = vpop.xlane.xlu0 %367
    %v369 = vrcp.pop %v366
    %v370 = vmul.f32 %v366, %v369
    %v371 = vsub.f32 1.0, %v370
    %v372 = vmul.f32 %v369, %v371
    %v373 = vadd.f32 %v369, %v372
    %vm374 = vweird.f32 %v366
    %vm375 = vweird.f32 %v369
    %vm376 = vmor %vm374, %vm375
    %v377 = vsel %vm376, %v369, %v373
    %v378 = vand.u32 2147483647, %v366
    %vm379 = vcmp.eq.f32.partialorder %v378, 8.507059e+37
    %v380 = vand.u32 %v366, 2147483648
    %v381 = vor.u32 1.1754944e-38, %v380
    %v382 = vsel %vm379, %v381, %v377
    %v383 = vrcp.pop %v368
    %v384 = vmul.f32 %v368, %v383
    %v385 = vsub.f32 1.0, %v384
    %v386 = vmul.f32 %v383, %v385
    %v387 = vadd.f32 %v383, %v386
    %vm388 = vweird.f32 %v368
    %vm389 = vweird.f32 %v383
    %vm390 = vmor %vm388, %vm389
    %v391 = vsel %vm390, %v383, %v387
    %v392 = vand.u32 2147483647, %v368
    %vm393 = vcmp.eq.f32.partialorder %v392, 8.507059e+37
    %v394 = vand.u32 %v368, 2147483648
    %v395 = vor.u32 1.1754944e-38, %v394
    %v396 = vsel %vm393, %v395, %v391
    %v397 = vmul.f32 %v362, %v382
    %v398 = vmul.f32 %v364, %v396
    %v399 = vld [vmem:[#allocation2] sm:$0xff]
    %v400 = vld [vmem:[#allocation2 + $0x8] sm:$0xff]
    %v401 = vld [vmem:[#allocation2 + $0x10] sm:$0xff]
    %v402 = vld [vmem:[#allocation2 + $0x18] sm:$0xff]
    %v403 = vld [vmem:[#allocation2 + $0x20] sm:$0xff]
    %v404 = vld [vmem:[#allocation2 + $0x28] sm:$0xff]
    %v405 = vld [vmem:[#allocation2 + $0x30] sm:$0xff]
    %v406 = vld [vmem:[#allocation2 + $0x38] sm:$0xff]
    %v407 = vld [vmem:[#allocation2 + $0x40] sm:$0xff]
    %v408 = vld [vmem:[#allocation2 + $0x48] sm:$0xff]
    %v409 = vld [vmem:[#allocation2 + $0x50] sm:$0xff]
    %v410 = vld [vmem:[#allocation2 + $0x58] sm:$0xff]
    %v411 = vld [vmem:[#allocation2 + $0x60] sm:$0xff]
    %v412 = vld [vmem:[#allocation2 + $0x68] sm:$0xff]
    %v413 = vld [vmem:[#allocation2 + $0x70] sm:$0xff]
    %v414 = vld [vmem:[#allocation2 + $0x78] sm:$0xff]
    %415 = vmatpush.msra.mxu0 %v414
    %416 = vmatpush.msra.mxu0 %v413
    %417 = vmatpush.msra.mxu0 %v412
    %418 = vmatpush.msra.mxu0 %v411
    %419 = vmatpush.msra.mxu0 %v410
    %420 = vmatpush.msra.mxu0 %v409
    %421 = vmatpush.msra.mxu0 %v408
    %422 = vmatpush.msra.mxu0 %v407
    %423 = vmatpush.msra.mxu0 %v406
    %424 = vmatpush.msra.mxu0 %v405
    %425 = vmatpush.msra.mxu0 %v404
    %426 = vmatpush.msra.mxu0 %v403
    %427 = vmatpush.msra.mxu0 %v402
    %428 = vmatpush.msra.mxu0 %v401
    %429 = vmatpush.msra.mxu0 %v400
    %430 = vmatpush.msra.mxu0 %v399
    %431 = vmatmul.f32.gmra.mxu0 %v397
    %v432 = vpop.f32.mrf.mxu0
    %v433 = vadd.f32 0.0, %v432
    %434 = vmatmul.f32.gmra.mxu0 %v398
    %v435 = vpop.f32.mrf.mxu0
    %v436 = vadd.f32 0.0, %v435
    %437 = vdwg.mxu0
    %438 = vst [vmem:[#allocation5] sm:$0xff] %v433
    %439 = vst [vmem:[#allocation5 + $0x8] sm:$0xff] %v436
    %440 = vmatpush.msra.mxu0 %v321
    %441 = vmatpush.msra.mxu0 %v319
    %442 = vmatpush.msra.mxu0 %v317
    %443 = vmatpush.msra.mxu0 %v315
    %444 = vmatpush.msra.mxu0 %v313
    %445 = vmatpush.msra.mxu0 %v311
    %446 = vmatpush.msra.mxu0 %v309
    %447 = vmatpush.msra.mxu0 %v307
    %448 = vmatpush.msra.mxu0 %v305
    %449 = vmatpush.msra.mxu0 %v303
    %450 = vmatpush.msra.mxu0 %v301
    %451 = vmatpush.msra.mxu0 %v299
    %452 = vmatpush.msra.mxu0 %v297
    %453 = vmatpush.msra.mxu0 %v295
    %454 = vmatpush.msra.mxu0 %v293
    %455 = vmatpush.msra.mxu0 %v291
    %456 = vmatmul.f32.gmra.mxu0 %v90
    %v457 = vpop.f32.mrf.mxu0
    %v458 = vadd.f32 0.0, %v457
    %459 = vmatmul.f32.gmra.mxu0 %v91
    %v460 = vpop.f32.mrf.mxu0
    %v461 = vadd.f32 0.0, %v460
    %462 = vdwg.mxu0
    %s463 = scalar_lea.vmem %s3, 1
    %v464 = vld [vmem:[%s463] sm:$0x1]
    %vm465 = vcmp.gt.f32.partialorder %v464, 0.0
    %v466 = vsel %vm465, 1, 0
    %v467 = vperm.slane %v466, 0
    %vm468 = vcmp.eq.s32.totalorder %v467, 1
    %v470 = vperm.slane %v464, 0
    %v472 = vsel %vm468, %v458, %v470
    %v473 = vsel %vm468, %v461, %v470
    %474 = vmax.xlane.f32.xlu0 %v472
    %v475 = vpop.xlane.xlu0 %474
    %476 = vmax.xlane.f32.xlu0 %v473
    %v477 = vpop.xlane.xlu0 %476
    %v478 = vsub.f32 %v472, %v475
    %v479 = vsub.f32 %v473, %v477
    %v480 = vmul.f32 %v478, 1.442695
    %v481 = vpow.pop %v480
    %v482 = vmul.f32 %v479, 1.442695
    %v483 = vpow.pop %v482
    %484 = vadd.xlane.f32.xlu0 %v481
    %v485 = vpop.xlane.xlu0 %484
    %486 = vadd.xlane.f32.xlu0 %v483
    %v487 = vpop.xlane.xlu0 %486
    %v488 = vrcp.pop %v485
    %v489 = vmul.f32 %v485, %v488
    %v490 = vsub.f32 1.0, %v489
    %v491 = vmul.f32 %v488, %v490
    %v492 = vadd.f32 %v488, %v491
    %vm493 = vweird.f32 %v485
    %vm494 = vweird.f32 %v488
    %vm495 = vmor %vm493, %vm494
    %v496 = vsel %vm495, %v488, %v492
    %v497 = vand.u32 2147483647, %v485
    %vm498 = vcmp.eq.f32.partialorder %v497, 8.507059e+37
    %v499 = vand.u32 %v485, 2147483648
    %v500 = vor.u32 1.1754944e-38, %v499
    %v501 = vsel %vm498, %v500, %v496
    %v502 = vrcp.pop %v487
    %v503 = vmul.f32 %v487, %v502
    %v504 = vsub.f32 1.0, %v503
    %v505 = vmul.f32 %v502, %v504
    %v506 = vadd.f32 %v502, %v505
    %vm507 = vweird.f32 %v487
    %vm508 = vweird.f32 %v502
    %vm509 = vmor %vm507, %vm508
    %v510 = vsel %vm509, %v502, %v506
    %v511 = vand.u32 2147483647, %v487
    %vm512 = vcmp.eq.f32.partialorder %v511, 8.507059e+37
    %v513 = vand.u32 %v487, 2147483648
    %v514 = vor.u32 1.1754944e-38, %v513
    %v515 = vsel %vm512, %v514, %v510
    %v516 = vmul.f32 %v481, %v501
    %v517 = vmul.f32 %v483, %v515
    %v518 = vld [vmem:[#allocation2 + $0x80] sm:$0xff]
    %v519 = vld [vmem:[#allocation2 + $0x88] sm:$0xff]
    %v520 = vld [vmem:[#allocation2 + $0x90] sm:$0xff]
    %v521 = vld [vmem:[#allocation2 + $0x98] sm:$0xff]
    %v522 = vld [vmem:[#allocation2 + $0xa0] sm:$0xff]
    %v523 = vld [vmem:[#allocation2 + $0xa8] sm:$0xff]
    %v524 = vld [vmem:[#allocation2 + $0xb0] sm:$0xff]
    %v525 = vld [vmem:[#allocation2 + $0xb8] sm:$0xff]
    %v526 = vld [vmem:[#allocation2 + $0xc0] sm:$0xff]
    %v527 = vld [vmem:[#allocation2 + $0xc8] sm:$0xff]
    %v528 = vld [vmem:[#allocation2 + $0xd0] sm:$0xff]
    %v529 = vld [vmem:[#allocation2 + $0xd8] sm:$0xff]
    %v530 = vld [vmem:[#allocation2 + $0xe0] sm:$0xff]
    %v531 = vld [vmem:[#allocation2 + $0xe8] sm:$0xff]
    %v532 = vld [vmem:[#allocation2 + $0xf0] sm:$0xff]
    %v533 = vld [vmem:[#allocation2 + $0xf8] sm:$0xff]
    %534 = vmatpush.msra.mxu0 %v533
    %535 = vmatpush.msra.mxu0 %v532
    %536 = vmatpush.msra.mxu0 %v531
    %537 = vmatpush.msra.mxu0 %v530
    %538 = vmatpush.msra.mxu0 %v529
    %539 = vmatpush.msra.mxu0 %v528
    %540 = vmatpush.msra.mxu0 %v527
    %541 = vmatpush.msra.mxu0 %v526
    %542 = vmatpush.msra.mxu0 %v525
    %543 = vmatpush.msra.mxu0 %v524
    %544 = vmatpush.msra.mxu0 %v523
    %545 = vmatpush.msra.mxu0 %v522
    %546 = vmatpush.msra.mxu0 %v521
    %547 = vmatpush.msra.mxu0 %v520
    %548 = vmatpush.msra.mxu0 %v519
    %549 = vmatpush.msra.mxu0 %v518
    %550 = vmatmul.f32.gmra.mxu0 %v516
    %v551 = vpop.f32.mrf.mxu0
    %v552 = vadd.f32 0.0, %v551
    %553 = vmatmul.f32.gmra.mxu0 %v517
    %v554 = vpop.f32.mrf.mxu0
    %v555 = vadd.f32 0.0, %v554
    %556 = vdwg.mxu0
    %557 = vst [vmem:[#allocation5 + $0x10] sm:$0xff] %v552
    %558 = vst [vmem:[#allocation5 + $0x18] sm:$0xff] %v555
    // Predicated region
    $region30: #{tpu_custom_call.1} parent=1 // pred_check
      _
    $region31: #{tpu_custom_call.1} parent=1 // pred_check_branch
      %560 = sbr.rel (0) target = $region33
    $region32: #{tpu_custom_call.1} parent=1 // pred_region
      %562 = vsyncadd [#allocation4], 0
      %s563 = sshll.u32 [#allocation5], 4
      %s564 = int_to_ptr.vmem [resolvable:$true] %s563
      %s565 = sshll.u32 %s6, 4
      %s566 = int_to_ptr.hbm [resolvable:$true] %s565
      %571 = dma.vmem_to_hbm [thread:$0]  %s564, 512, %s566, [#allocation4], 128, 128, 8
    $region33: #{tpu_custom_call.1} parent=1 // pred_fallthru
      _
    // Predicated region
    $region34: #{tpu_custom_call.1} parent=1 // pred_check
      _
    $region35: #{tpu_custom_call.1} parent=1 // pred_check_branch
      %573 = sbr.rel (0) target = $region37
    $region36: #{tpu_custom_call.1} parent=1 // pred_region
      %575 = dma.done [#allocation4], 512
    $region37: #{tpu_custom_call.1} parent=1 // pred_fallthru
      _
    %576 = vsyncpa [#allocation3], 1
    %577 = vsyncpa [#allocation4], 1

</llo_original>
